<compile_context>
chip_gen: v7x
topology: tpu7x:2x2x1
jax: 0.10.0
libtpu: 0.0.40
codegen_flags: <defaults>
</compile_context>

<pallas_src>
import jax
import jax.numpy as jnp
from jax.experimental import pallas as pl
from jax.experimental.pallas import tpu as pltpu


def _attention1_kernel(x_ref, w_ref, b_ref, o_ref):
    # One MXU pass per batch tile: out = x @ W_proj + b_proj (lane-contiguous
    # full-width output row, so the store is a plain writeback).
    o_ref[...] = (
        jnp.dot(x_ref[...], w_ref[...], preferred_element_type=jnp.float32)
        + b_ref[...]
    ).astype(o_ref.dtype)


def _pick_batch_tile(B, block_b, min_steps=4):
    """Batch tile: big enough to amortize per-grid-step overhead, small enough
    that the grid has >= min_steps balanced steps so v7x's two TensorCores
    both get work (harmless on v5e/v6e)."""
    if B <= 8:
        return B                                   # single tiny tile
    tm = min(block_b, pl.cdiv(B, min_steps))
    tm = max(8, (tm // 8) * 8)                     # sublane-aligned
    return tm


def attention1(x, w_fc, b_fc, w_score, b_score, w_proj, b_proj, *, block_b=4096):
    """Forward pass of Attention1.

    x:       [B, D]  with D = input_dim = 2 * hidden_dim
    w_fc:    [D, H], b_fc: [1, H]      -- unused (dead branch, see header)
    w_score: [1, H], b_score: [1, 1]   -- unused (dead branch, see header)
    w_proj:  [D, H], b_proj: [1, H]    (PyTorch Linear weights stored [in, out])
    returns  [B, H]
    """
    # Softmax over a size-1 dim == 1 exactly -> attention branch has no effect.
    del w_fc, b_fc, w_score, b_score

    B, D = x.shape
    H = w_proj.shape[1]

    tm = _pick_batch_tile(B, block_b)
    grid = (pl.cdiv(B, tm),)

    itemsize = jnp.dtype(x.dtype).itemsize
    cost = pl.CostEstimate(
        flops=2 * B * D * H,
        transcendentals=0,
        bytes_accessed=(B * (D + H) + D * H + H) * itemsize,
    )

    # Ragged last tile is safe: each output row depends only on its own input
    # row, and out-of-bounds rows are dropped on writeback.
    return pl.pallas_call(
        _attention1_kernel,
        out_shape=jax.ShapeDtypeStruct((B, H), x.dtype),
        grid=grid,
        in_specs=[
            pl.BlockSpec((tm, D), lambda i: (i, 0)),   # x: tiled over batch
            pl.BlockSpec((D, H), lambda i: (0, 0)),    # W_proj: resident
            pl.BlockSpec((1, H), lambda i: (0, 0)),    # b_proj: resident
        ],
        out_specs=pl.BlockSpec((tm, H), lambda i: (i, 0)),
        compiler_params=pltpu.CompilerParams(
            dimension_semantics=("parallel",),         # batch sharded over TCs (v7x)
        ),
        cost_estimate=cost,
    )(x, w_proj, b_proj)


def attention1_ref(x, w_fc, b_fc, w_score, b_score, w_proj, b_proj):
    """Pure-JAX reference reproducing the PyTorch forward literally."""
    h = jnp.tanh(x @ w_fc + b_fc)
    s = h @ w_score.T + b_score            # [B, 1]
    a = jax.nn.softmax(s, axis=1)          # all ones (length-1 axis)
    return (x * a) @ w_proj + b_proj


if __name__ == "__main__":
    hidden_dim = 32
    input_dim = 2 * hidden_dim             # forward expects fused_features [B, 2*hidden]

    key = jax.random.PRNGKey(0)
    k1, k2, k3, k4, k5, k6, kx1, kx2, kx3 = jax.random.split(key, 9)

    # PyTorch Linear parameters, stored as [in, out].
    w_fc = jax.random.normal(k1, (input_dim, hidden_dim), jnp.float32) * 0.1
    b_fc = jax.random.normal(k2, (1, hidden_dim), jnp.float32) * 0.1
    w_score = jax.random.normal(k3, (1, hidden_dim), jnp.float32) * 0.1
    b_score = jax.random.normal(k4, (1, 1), jnp.float32) * 0.1
    w_proj = jax.random.normal(k5, (input_dim, hidden_dim), jnp.float32) * 0.1
    b_proj = jax.random.normal(k6, (1, hidden_dim), jnp.float32) * 0.1
    params = (w_fc, b_fc, w_score, b_score, w_proj, b_proj)

    attn = jax.jit(attention1)

    # Batches: tiny (single tile), non-multiple-of-8 (ragged edge tile), and a
    # larger batch (multi-step grid -> both v7x TensorCores busy).
    for kx, batch in ((kx1, 8), (kx2, 10), (kx3, 640)):
        x = jax.random.normal(kx, (batch, input_dim), jnp.float32)
        out = jax.block_until_ready(attn(x, *params))
        ref = attention1_ref(x, *params)
        assert out.shape == (batch, hidden_dim)
        assert jnp.allclose(out, ref, atol=1e-5, rtol=1e-5)

    print("KERNEL_OK")
</pallas_src>

<mosaic_0001>
module attributes {stable_mosaic.version = 11 : i64} {
  func.func @_attention1_kernel(%arg0: i32, %arg1: memref<8x64xf32, #tpu.memory_space<vmem>>, %arg2: memref<64x32xf32, #tpu.memory_space<vmem>>, %arg3: memref<1x32xf32, #tpu.memory_space<vmem>>, %arg4: memref<8x32xf32, #tpu.memory_space<vmem>>) attributes {dimension_semantics = [#tpu.dimension_semantics<parallel>], iteration_bounds = array<i64: 1>, scalar_prefetch = 0 : i64, scratch_operands = 0 : i64, tpu.core_type = #tpu.core_type<tc>, window_params = [{transform_indices = @transform_0, window_bounds = array<i64: 8, 64>}, {pipeline_mode = #tpu.pipeline_mode<synchronous>, transform_indices = @transform_1, window_bounds = array<i64: 64, 32>}, {pipeline_mode = #tpu.pipeline_mode<synchronous>, transform_indices = @transform_2, window_bounds = array<i64: 1, 32>}, {transform_indices = @transform_3, window_bounds = array<i64: 8, 32>}]} {
    %c0 = arith.constant 0 : index
    %c0_0 = arith.constant 0 : index
    %0 = vector.load %arg1[%c0, %c0_0] : memref<8x64xf32, #tpu.memory_space<vmem>>, vector<8x64xf32>
    %c0_1 = arith.constant 0 : index
    %c0_2 = arith.constant 0 : index
    %1 = vector.load %arg2[%c0_1, %c0_2] : memref<64x32xf32, #tpu.memory_space<vmem>>, vector<64x32xf32>
    %cst = arith.constant dense<0.000000e+00> : vector<8x32xf32>
    %2 = tpu.matmul %0, %1, %cst {dimension_numbers = #tpu.dot_dimension_numbers<[1], [0], [0], [1], [0, 0, 1, 1], [], []>} : vector<8x64xf32>, vector<64x32xf32>, vector<8x32xf32> -> vector<8x32xf32>
    %c0_3 = arith.constant 0 : index
    %c0_4 = arith.constant 0 : index
    %3 = vector.load %arg3[%c0_3, %c0_4] : memref<1x32xf32, #tpu.memory_space<vmem>>, vector<1x32xf32>
    %4 = vector.broadcast %3 : vector<1x32xf32> to vector<8x32xf32>
    %5 = arith.addf %2, %4 : vector<8x32xf32>
    %c0_5 = arith.constant 0 : index
    %c0_6 = arith.constant 0 : index
    %6 = vector.load %arg4[%c0_5, %c0_6] : memref<8x32xf32, #tpu.memory_space<vmem>>, vector<8x32xf32>
    tpu.vector_store %arg4[%c0_5, %c0_6], %5 {strides = array<i32>} : memref<8x32xf32, #tpu.memory_space<vmem>>, vector<8x32xf32>,
    return
  }
  func.func @transform_0(%arg0: i32) -> (i32, i32) {
    %c0_i32 = arith.constant 0 : i32
    %c0_i32_0 = arith.constant 0 : i32
    return %arg0, %c0_i32 : i32, i32
  }
  func.func @transform_1(%arg0: i32) -> (i32, i32) {
    %c0_i32 = arith.constant 0 : i32
    %c0_i32_0 = arith.constant 0 : i32
    %c0_i32_1 = arith.constant 0 : i32
    return %c0_i32, %c0_i32_0 : i32, i32
  }
  func.func @transform_2(%arg0: i32) -> (i32, i32) {
    %c0_i32 = arith.constant 0 : i32
    %c0_i32_0 = arith.constant 0 : i32
    %c0_i32_1 = arith.constant 0 : i32
    return %c0_i32, %c0_i32_0 : i32, i32
  }
  func.func @transform_3(%arg0: i32) -> (i32, i32) {
    %c0_i32 = arith.constant 0 : i32
    %c0_i32_0 = arith.constant 0 : i32
    return %arg0, %c0_i32 : i32, i32
  }
}

</mosaic_0001>

<llo_original>
// kernel: attention1.1
$region0: #{attention1.1}
  #allocation0 [shape = 'u32[]', space=smem, size = 0x4, offset = 0x4, fixed_abs, tag = 'smem constant byte address 0x4 - core index']
  #allocation1 [shape = 'u32[144,128]{1,0:T(1,128)}', space=vmem, size = 0x12000, scoped, tag = 'internal scratch']
  %s0 = inlined_call_operand.vmem [shape: f32[8,64], index: 0, kind: input, shape index: {}]
  %s1 = inlined_call_operand.vmem [shape: f32[64,32], index: 1, kind: input, shape index: {}]
  %s2 = inlined_call_operand.vmem [shape: f32[1,32], index: 2, kind: input, shape index: {}]
  %s3 = inlined_call_operand.hbm [shape: f32[8,32], index: 3, kind: output, shape index: {}]
  %s4 = sld [smem:[#allocation0]]
  $region22: #{attention1.1} parent=0
    _
  %s6 = ssub.s32 1, %s4
  %s7 = scalar_select 0, %s6, %s4
  $region1: #{attention1.1} parent=0
    #allocation2 [shape = 'u8[4096]{0}', space=vmem, size = 0x1000, scoped, tag = 'output window, operand 0, single buffered']
    #allocation3 [shape = 's32[1]{0}', space=sflag, size = 0x4, scoped, tag = 'scoped memory for attention1.1']
    %8 = vsyncpa [#allocation3], 0
    // Predicated region
    $region2: #{attention1.1} parent=1 // pred_check
      _
    $region3: #{attention1.1} parent=1 // pred_check_branch
      %10 = sbr.rel (0) target = $region5
    $region4: #{attention1.1} parent=1 // pred_region
      _
    $region5: #{attention1.1} parent=1 // pred_fallthru
      _
    // Predicated region
    $region6: #{attention1.1} parent=1 // pred_check
      _
    $region7: #{attention1.1} parent=1 // pred_check_branch
      %12 = sbr.rel (0) target = $region9
    $region8: #{attention1.1} parent=1 // pred_region
      _
    $region9: #{attention1.1} parent=1 // pred_fallthru
      _
    // Predicated region
    $region10: #{attention1.1} parent=1 // pred_check
      _
    $region11: #{attention1.1} parent=1 // pred_check_branch
      %14 = sbr.rel (0) target = $region13
    $region12: #{attention1.1} parent=1 // pred_region
      _
    $region13: #{attention1.1} parent=1 // pred_fallthru
      _
    %v15 = vld [vmem:[%s0] sm:$0xff]
    %v16 = vld [vmem:[%s1] sm:$0xff]
    %v17 = vld [vmem:[%s1 + $0x8] sm:$0xff]
    %v18 = vld [vmem:[%s1 + $0x10] sm:$0xff]
    %v19 = vld [vmem:[%s1 + $0x18] sm:$0xff]
    %v20 = vld [vmem:[%s1 + $0x20] sm:$0xff]
    %v21 = vld [vmem:[%s1 + $0x28] sm:$0xff]
    %v22 = vld [vmem:[%s1 + $0x30] sm:$0xff]
    %v23 = vld [vmem:[%s1 + $0x38] sm:$0xff]
    %v24 = vld [vmem:[%s2] sm:$0x1]
    %v26 = vlaneseq
    %v27 = vshrl.u32 %v26, 7
    %v28 = vsub.s32 0, %v27
    %v29 = vrot.slane %v24, %v28
    %vm31 = vcmask 523264
    %v33 = vsel %vm31, %v15, 0
    %35 = vmatprep.subr.mxu0 0.0
    %36 = vmatpush1.msra.mxu0 %v16
    %37 = vmatprep.subr.mxu0 0.0
    %38 = vmatpush1.msra.mxu0 %v17
    %39 = vmatprep.subr.mxu0 0.0
    %40 = vmatpush1.msra.mxu0 %v18
    %41 = vmatprep.subr.mxu0 0.0
    %42 = vmatpush1.msra.mxu0 %v19
    %43 = vmatprep.subr.mxu0 0.0
    %44 = vmatpush1.msra.mxu0 %v20
    %45 = vmatprep.subr.mxu0 0.0
    %46 = vmatpush1.msra.mxu0 %v21
    %47 = vmatprep.subr.mxu0 0.0
    %48 = vmatpush1.msra.mxu0 %v22
    %49 = vmatprep.subr.mxu0 0.0
    %50 = vmatpush1.msra.mxu0 %v23
    %51 = vmatprep.subr.mxu0 0.0
    %52 = vmatpush1.msra.mxu0 0.0
    %53 = vmatprep.subr.mxu0 0.0
    %54 = vmatpush1.msra.mxu0 0.0
    %55 = vmatprep.subr.mxu0 0.0
    %56 = vmatpush1.msra.mxu0 0.0
    %57 = vmatprep.subr.mxu0 0.0
    %58 = vmatpush1.msra.mxu0 0.0
    %59 = vmatprep.subr.mxu0 0.0
    %60 = vmatpush1.msra.mxu0 0.0
    %61 = vmatprep.subr.mxu0 0.0
    %62 = vmatpush1.msra.mxu0 0.0
    %63 = vmatprep.subr.mxu0 0.0
    %64 = vmatpush1.msra.mxu0 0.0
    %65 = vmatprep.subr.mxu0 0.0
    %66 = vmatpush1.msra.mxu0 0.0
    %67 = vmatprep.subr.mxu0 0.0
    %68 = vmatpush1.msra.mxu0 0.0
    %69 = vmatprep.subr.mxu0 0.0
    %70 = vmatpush1.msra.mxu0 0.0
    %71 = vmatprep.subr.mxu0 0.0
    %72 = vmatpush1.msra.mxu0 0.0
    %73 = vmatprep.subr.mxu0 0.0
    %74 = vmatpush1.msra.mxu0 0.0
    %75 = vmatprep.subr.mxu0 0.0
    %76 = vmatpush1.msra.mxu0 0.0
    %77 = vmatprep.subr.mxu0 0.0
    %78 = vmatpush1.msra.mxu0 0.0
    %79 = vmatprep.subr.mxu0 0.0
    %80 = vmatpush1.msra.mxu0 0.0
    %81 = vmatprep.subr.mxu0 0.0
    %82 = vmatpush1.msra.mxu0 0.0
    %83 = vmatprep.subr.mxu0 0.0
    %84 = vmatpush1.msra.mxu0 0.0
    %85 = vmatprep.subr.mxu0 0.0
    %86 = vmatpush1.msra.mxu0 0.0
    %87 = vmatprep.subr.mxu0 0.0
    %88 = vmatpush1.msra.mxu0 0.0
    %89 = vmatprep.subr.mxu0 0.0
    %90 = vmatpush1.msra.mxu0 0.0
    %91 = vmatprep.subr.mxu0 0.0
    %92 = vmatpush1.msra.mxu0 0.0
    %93 = vmatprep.subr.mxu0 0.0
    %94 = vmatpush1.msra.mxu0 0.0
    %95 = vmatprep.subr.mxu0 0.0
    %96 = vmatpush1.msra.mxu0 0.0
    %97 = vmatprep.subr.mxu0 0.0
    %98 = vmatpush1.msra.mxu0 0.0
    %99 = vmatprep.mubr.f32.mxu0 0.0
    %100 = vmatmul.mubr.f32.gmra.mrb[0].mxu0 %v33
    %v101 = vpop.f32.mrb[0].mxu0
    %v102 = vadd.f32 %v29, %v101
    %v103 = vpop.f32.mrb[0].mxu0
    %104 = vdwg.mxu0
    %vm105 = vcmask 261120
    %106 = vst.msk [vmem:[#allocation2] sm:$0xff] %vm105, %v102
    // Predicated region
    $region14: #{attention1.1} parent=1 // pred_check
      _
    $region15: #{attention1.1} parent=1 // pred_check_branch
      %108 = sbr.rel (0) target = $region17
    $region16: #{attention1.1} parent=1 // pred_region
      %s110 = ssub.s32 128, 128
      %111 = vsyncadd [#allocation3], %s110
      %s113 = sshll.u32 [#allocation2], 4
      %s114 = int_to_ptr.vmem [resolvable:$true] %s113
      %116 = dma.vmem_to_hbm [thread:$0]  %s114, 128, %s3, [#allocation3]
    $region17: #{attention1.1} parent=1 // pred_fallthru
      _
    // Predicated region
    $region18: #{attention1.1} parent=1 // pred_check
      _
    $region19: #{attention1.1} parent=1 // pred_check_branch
      %118 = sbr.rel (0) target = $region21
    $region20: #{attention1.1} parent=1 // pred_region
      %119 = dma.done [#allocation3], 128
    $region21: #{attention1.1} parent=1 // pred_fallthru
      _
    %120 = vsyncpa [#allocation3], 1

</llo_original>
